<compile_context>
chip_gen: v7x
topology: tpu7x:2x2x1
jax: 0.10.0
libtpu: 0.0.40
codegen_flags: <defaults>
</compile_context>

<pallas_src>
import functools

import jax
import jax.numpy as jnp
from jax import lax
from jax.experimental import pallas as pl
from jax.experimental.pallas import tpu as pltpu


_LANE = 128     # lane width (last-dim alignment target)
_SUBLANE = 8    # sublane width (second-to-last dim alignment target)

# Keep the single-block path well inside the default scoped-VMEM budget
# (v7x has only 64 MiB physical VMEM / 32 MiB default scoped limit).
_SINGLE_BLOCK_VMEM_BUDGET = 4 * 1024 * 1024   # bytes


def _round_up(v: int, m: int) -> int:
    return (v + m - 1) // m * m


# ----------------------------------------------------------------------------
# Kernels
# ----------------------------------------------------------------------------
def _mlp_single_block_kernel(x_ref, w_ref, b_ref, o_ref):
    """Whole problem in one VMEM-resident block: y = x @ w.T + b (f32 acc)."""
    acc = lax.dot_general(
        x_ref[...], w_ref[...],                      # (Bp,Kp) x (Np,Kp)
        dimension_numbers=(((1,), (1,)), ((), ())),  # contract K of both
        preferred_element_type=jnp.float32,
    )                                                # (Bp, Np) f32
    o_ref[...] = (acc + b_ref[...]).astype(o_ref.dtype)


def _mlp_tiled_kernel(x_ref, w_ref, b_ref, o_ref, acc_ref):
    """Grid (Bt, Nt, Kt); K is the innermost reduction axis (accumulator)."""
    k = pl.program_id(2)

    @pl.when(k == 0)
    def _():
        acc_ref[...] = jnp.zeros_like(acc_ref)

    acc_ref[...] += lax.dot_general(
        x_ref[...], w_ref[...],                      # (tb,tk) x (tn,tk)
        dimension_numbers=(((1,), (1,)), ((), ())),
        preferred_element_type=jnp.float32,
    )

    @pl.when(k == pl.num_programs(2) - 1)
    def _():
        o_ref[...] = (acc_ref[...] + b_ref[...]).astype(o_ref.dtype)


# ----------------------------------------------------------------------------
# Wrappers
# ----------------------------------------------------------------------------
def _pad_operands(x, weight, bias, Bp, Kp, Np):
    B, K = x.shape
    N, _ = weight.shape
    x_p = x if (Bp == B and Kp == K) else jnp.pad(x, ((0, Bp - B), (0, Kp - K)))
    w_p = weight if (Np == N and Kp == K) else jnp.pad(
        weight, ((0, Np - N), (0, Kp - K)))
    b_p = bias if Np == N else jnp.pad(bias, (0, Np - N))
    return x_p, w_p, b_p.reshape(1, Np)


def _mlp_single_block(x, weight, bias):
    B, K = x.shape
    N, _ = weight.shape

    Bp = _round_up(B, _SUBLANE)
    Kp = _round_up(K, _LANE)
    Np = _round_up(N, _LANE)
    x_p, w_p, b_p = _pad_operands(x, weight, bias, Bp, Kp, Np)

    out_p = pl.pallas_call(
        _mlp_single_block_kernel,
        out_shape=jax.ShapeDtypeStruct((Bp, Np), x.dtype),
        # No grid: one invocation, whole problem resident in VMEM.
        in_specs=[
            pl.BlockSpec(memory_space=pltpu.MemorySpace.VMEM),  # x      (Bp, Kp)
            pl.BlockSpec(memory_space=pltpu.MemorySpace.VMEM),  # weight (Np, Kp)
            pl.BlockSpec(memory_space=pltpu.MemorySpace.VMEM),  # bias   (1,  Np)
        ],
        out_specs=pl.BlockSpec(memory_space=pltpu.MemorySpace.VMEM),
    )(x_p, w_p, b_p)

    return out_p[:B, :N]


def _mlp_tiled(x, weight, bias, *, tb=256, tn=256, tk=512):
    B, K = x.shape
    N, _ = weight.shape

    # Clamp tiles to the (aligned) problem size.
    tb = min(tb, _round_up(B, _SUBLANE))   # multiple of 8
    tn = min(tn, _round_up(N, _LANE))      # multiple of 128
    tk = min(tk, _round_up(K, _LANE))      # multiple of 128

    Bp = _round_up(B, tb)
    Np = _round_up(N, tn)
    Kp = _round_up(K, tk)
    x_p, w_p, b_p = _pad_operands(x, weight, bias, Bp, Kp, Np)

    grid = (Bp // tb, Np // tn, Kp // tk)

    out_p = pl.pallas_call(
        _mlp_tiled_kernel,
        out_shape=jax.ShapeDtypeStruct((Bp, Np), x.dtype),
        grid_spec=pltpu.PrefetchScalarGridSpec(
            num_scalar_prefetch=0,
            grid=grid,
            in_specs=[
                pl.BlockSpec((tb, tk), lambda i, j, k: (i, k)),  # x
                pl.BlockSpec((tn, tk), lambda i, j, k: (j, k)),  # weight (N, K)
                pl.BlockSpec((1, tn), lambda i, j, k: (0, j)),   # bias
            ],
            out_specs=pl.BlockSpec((tb, tn), lambda i, j, k: (i, j)),
            scratch_shapes=[pltpu.VMEM((tb, tn), jnp.float32)],
        ),
        compiler_params=pltpu.CompilerParams(
            dimension_semantics=("parallel", "parallel", "arbitrary")),
    )(x_p, w_p, b_p)

    return out_p[:B, :N]


def _mlp_forward(x, weight, bias):
    """y = x @ weight.T + bias; dispatch on (static) shapes."""
    B, K = x.shape
    N, K2 = weight.shape
    assert K == K2, "in_features mismatch"

    Bp = _round_up(B, _SUBLANE)
    Kp = _round_up(K, _LANE)
    Np = _round_up(N, _LANE)
    itemsize = x.dtype.itemsize
    footprint = (Bp * Kp + Np * Kp + Np + Bp * Np) * itemsize

    if footprint <= _SINGLE_BLOCK_VMEM_BUDGET:
        return _mlp_single_block(x, weight, bias)
    return _mlp_tiled(x, weight, bias)


mlp_forward = jax.jit(_mlp_forward)
mlp_forward_tiled = jax.jit(
    functools.partial(_mlp_tiled, tb=256, tn=256, tk=512))


if __name__ == "__main__":
    # Module config: MLP(output_size=32, input_size=120)
    input_size = 120
    output_size = 32
    batch = 8

    key = jax.random.PRNGKey(0)
    k_x, k_w, k_b, k_x2, k_w2, k_b2 = jax.random.split(key, 6)

    # Deterministic parameter init mimicking nn.Linear's U(-1/sqrt(in), 1/sqrt(in)).
    bound = 1.0 / (input_size ** 0.5)
    weight = jax.random.uniform(
        k_w, (output_size, input_size), jnp.float32, minval=-bound, maxval=bound)
    bias = jax.random.uniform(
        k_b, (output_size,), jnp.float32, minval=-bound, maxval=bound)
    x = jax.random.normal(k_x, (batch, input_size), jnp.float32)

    # --- primary: module-sized problem through the single-block path --------
    y = jax.block_until_ready(mlp_forward(x, weight, bias))
    y_ref = x @ weight.T + bias
    assert y.shape == (batch, output_size)
    assert jnp.allclose(y, y_ref, atol=1e-5, rtol=1e-5), "mismatch vs reference"

    # --- secondary: exercise the tiled multi-block path on a larger shape ----
    B2, K2, N2 = 512, 640, 384
    bound2 = 1.0 / (K2 ** 0.5)
    w2 = jax.random.uniform(k_w2, (N2, K2), jnp.float32, minval=-bound2, maxval=bound2)
    b2 = jax.random.uniform(k_b2, (N2,), jnp.float32, minval=-bound2, maxval=bound2)
    x2 = jax.random.normal(k_x2, (B2, K2), jnp.float32)

    y2 = jax.block_until_ready(mlp_forward_tiled(x2, w2, b2))
    y2_ref = jnp.dot(x2, w2.T, precision=jax.lax.Precision.HIGHEST) + b2
    assert y2.shape == (B2, N2)
    assert jnp.allclose(y2, y2_ref, atol=1e-2, rtol=1e-2), "tiled mismatch vs reference"

    print("KERNEL_OK")
</pallas_src>

<mosaic_0001>
module attributes {stable_mosaic.version = 11 : i64} {
  func.func @_mlp_single_block_kernel(%arg0: memref<8x128xf32, #tpu.memory_space<vmem>>, %arg1: memref<128x128xf32, #tpu.memory_space<vmem>>, %arg2: memref<1x128xf32, #tpu.memory_space<vmem>>, %arg3: memref<8x128xf32, #tpu.memory_space<vmem>>) attributes {dimension_semantics = [], scalar_prefetch = 0 : i64, scratch_operands = 0 : i64, tpu.core_type = #tpu.core_type<tc>} {
    %c0 = arith.constant 0 : index
    %c0_0 = arith.constant 0 : index
    %0 = vector.load %arg0[%c0, %c0_0] : memref<8x128xf32, #tpu.memory_space<vmem>>, vector<8x128xf32>
    %c0_1 = arith.constant 0 : index
    %c0_2 = arith.constant 0 : index
    %1 = vector.load %arg1[%c0_1, %c0_2] : memref<128x128xf32, #tpu.memory_space<vmem>>, vector<128x128xf32>
    %cst = arith.constant dense<0.000000e+00> : vector<8x128xf32>
    %2 = tpu.matmul %0, %1, %cst {dimension_numbers = #tpu.dot_dimension_numbers<[1], [1], [0], [0], [0, 0, 1, 0], [], []>} : vector<8x128xf32>, vector<128x128xf32>, vector<8x128xf32> -> vector<8x128xf32>
    %c0_3 = arith.constant 0 : index
    %c0_4 = arith.constant 0 : index
    %3 = vector.load %arg2[%c0_3, %c0_4] : memref<1x128xf32, #tpu.memory_space<vmem>>, vector<1x128xf32>
    %4 = vector.broadcast %3 : vector<1x128xf32> to vector<8x128xf32>
    %5 = arith.addf %2, %4 : vector<8x128xf32>
    %c0_5 = arith.constant 0 : index
    %c0_6 = arith.constant 0 : index
    %6 = vector.load %arg3[%c0_5, %c0_6] : memref<8x128xf32, #tpu.memory_space<vmem>>, vector<8x128xf32>
    tpu.vector_store %arg3[%c0_5, %c0_6], %5 {strides = array<i32>} : memref<8x128xf32, #tpu.memory_space<vmem>>, vector<8x128xf32>,
    return
  }
}

</mosaic_0001>

<llo_original>
// kernel: _mlp_forward.1
$region0: #{_mlp_forward.1}
  #allocation0 [shape = 'u32[]', space=smem, size = 0x4, offset = 0x4, fixed_abs, tag = 'smem constant byte address 0x4 - core index']
  #allocation1 [shape = 'u32[144,128]{1,0:T(1,128)}', space=vmem, size = 0x12000, scoped, tag = 'internal scratch']
  %s0 = inlined_call_operand.vmem [shape: f32[8,128], index: 0, kind: input, shape index: {}]
  %s1 = inlined_call_operand.vmem [shape: f32[128,128], index: 1, kind: input, shape index: {}]
  %s2 = inlined_call_operand.vmem [shape: f32[1,128], index: 2, kind: input, shape index: {}]
  %s3 = inlined_call_operand.hbm [shape: f32[8,128], index: 3, kind: output, shape index: {}]
  %s4 = sld [smem:[#allocation0]]
  $region22: #{_mlp_forward.1} parent=0
    _
  %s6 = ssub.s32 1, %s4
  %s7 = scalar_select 0, %s6, %s4
  $region1: #{_mlp_forward.1} parent=0
    #allocation2 [shape = 'u8[4096]{0}', space=vmem, size = 0x1000, scoped, tag = 'output window, operand 0, single buffered']
    #allocation3 [shape = 's32[1]{0}', space=sflag, size = 0x4, scoped, tag = 'scoped memory for _mlp_forward.1']
    %8 = vsyncpa [#allocation3], 0
    // Predicated region
    $region2: #{_mlp_forward.1} parent=1 // pred_check
      _
    $region3: #{_mlp_forward.1} parent=1 // pred_check_branch
      %10 = sbr.rel (0) target = $region5
    $region4: #{_mlp_forward.1} parent=1 // pred_region
      _
    $region5: #{_mlp_forward.1} parent=1 // pred_fallthru
      _
    // Predicated region
    $region6: #{_mlp_forward.1} parent=1 // pred_check
      _
    $region7: #{_mlp_forward.1} parent=1 // pred_check_branch
      %12 = sbr.rel (0) target = $region9
    $region8: #{_mlp_forward.1} parent=1 // pred_region
      _
    $region9: #{_mlp_forward.1} parent=1 // pred_fallthru
      _
    // Predicated region
    $region10: #{_mlp_forward.1} parent=1 // pred_check
      _
    $region11: #{_mlp_forward.1} parent=1 // pred_check_branch
      %14 = sbr.rel (0) target = $region13
    $region12: #{_mlp_forward.1} parent=1 // pred_region
      _
    $region13: #{_mlp_forward.1} parent=1 // pred_fallthru
      _
    %v15 = vld [vmem:[%s0] sm:$0xff]
    %v16 = vld [vmem:[%s1] sm:$0xff]
    %v17 = vld [vmem:[%s1 + $0x8] sm:$0xff]
    %v18 = vld [vmem:[%s1 + $0x10] sm:$0xff]
    %v19 = vld [vmem:[%s1 + $0x18] sm:$0xff]
    %v20 = vld [vmem:[%s1 + $0x20] sm:$0xff]
    %v21 = vld [vmem:[%s1 + $0x28] sm:$0xff]
    %v22 = vld [vmem:[%s1 + $0x30] sm:$0xff]
    %v23 = vld [vmem:[%s1 + $0x38] sm:$0xff]
    %v24 = vld [vmem:[%s1 + $0x40] sm:$0xff]
    %v25 = vld [vmem:[%s1 + $0x48] sm:$0xff]
    %v26 = vld [vmem:[%s1 + $0x50] sm:$0xff]
    %v27 = vld [vmem:[%s1 + $0x58] sm:$0xff]
    %v28 = vld [vmem:[%s1 + $0x60] sm:$0xff]
    %v29 = vld [vmem:[%s1 + $0x68] sm:$0xff]
    %v30 = vld [vmem:[%s1 + $0x70] sm:$0xff]
    %v31 = vld [vmem:[%s1 + $0x78] sm:$0xff]
    %v32 = vld [vmem:[%s2] sm:$0x1]
    %v34 = vlaneseq
    %v35 = vshrl.u32 %v34, 7
    %v36 = vsub.s32 0, %v35
    %v37 = vrot.slane %v32, %v36
    %39 = vmatprep.subr.mxu0 0.0
    %40 = vmatpush1.xpose.msra.mxu0 %v16
    %41 = vmatprep.subr.mxu0 0.0
    %42 = vmatpush1.xpose.msra.mxu0 %v17
    %43 = vmatprep.subr.mxu0 0.0
    %44 = vmatpush1.xpose.msra.mxu0 %v18
    %45 = vmatprep.subr.mxu0 0.0
    %46 = vmatpush1.xpose.msra.mxu0 %v19
    %47 = vmatprep.subr.mxu0 0.0
    %48 = vmatpush1.xpose.msra.mxu0 %v20
    %49 = vmatprep.subr.mxu0 0.0
    %50 = vmatpush1.xpose.msra.mxu0 %v21
    %51 = vmatprep.subr.mxu0 0.0
    %52 = vmatpush1.xpose.msra.mxu0 %v22
    %53 = vmatprep.subr.mxu0 0.0
    %54 = vmatpush1.xpose.msra.mxu0 %v23
    %55 = vmatprep.subr.mxu0 0.0
    %56 = vmatpush1.xpose.msra.mxu0 %v24
    %57 = vmatprep.subr.mxu0 0.0
    %58 = vmatpush1.xpose.msra.mxu0 %v25
    %59 = vmatprep.subr.mxu0 0.0
    %60 = vmatpush1.xpose.msra.mxu0 %v26
    %61 = vmatprep.subr.mxu0 0.0
    %62 = vmatpush1.xpose.msra.mxu0 %v27
    %63 = vmatprep.subr.mxu0 0.0
    %64 = vmatpush1.xpose.msra.mxu0 %v28
    %65 = vmatprep.subr.mxu0 0.0
    %66 = vmatpush1.xpose.msra.mxu0 %v29
    %67 = vmatprep.subr.mxu0 0.0
    %68 = vmatpush1.xpose.msra.mxu0 %v30
    %69 = vmatprep.subr.mxu0 0.0
    %70 = vmatpush1.xpose.msra.mxu0 %v31
    %71 = vmatprep.subr.mxu0 0.0
    %72 = vmatpush1.xpose.msra.mxu0 0.0
    %73 = vmatprep.subr.mxu0 0.0
    %74 = vmatpush1.xpose.msra.mxu0 0.0
    %75 = vmatprep.subr.mxu0 0.0
    %76 = vmatpush1.xpose.msra.mxu0 0.0
    %77 = vmatprep.subr.mxu0 0.0
    %78 = vmatpush1.xpose.msra.mxu0 0.0
    %79 = vmatprep.subr.mxu0 0.0
    %80 = vmatpush1.xpose.msra.mxu0 0.0
    %81 = vmatprep.subr.mxu0 0.0
    %82 = vmatpush1.xpose.msra.mxu0 0.0
    %83 = vmatprep.subr.mxu0 0.0
    %84 = vmatpush1.xpose.msra.mxu0 0.0
    %85 = vmatprep.subr.mxu0 0.0
    %86 = vmatpush1.xpose.msra.mxu0 0.0
    %87 = vmatprep.subr.mxu0 0.0
    %88 = vmatpush1.xpose.msra.mxu0 0.0
    %89 = vmatprep.subr.mxu0 0.0
    %90 = vmatpush1.xpose.msra.mxu0 0.0
    %91 = vmatprep.subr.mxu0 0.0
    %92 = vmatpush1.xpose.msra.mxu0 0.0
    %93 = vmatprep.subr.mxu0 0.0
    %94 = vmatpush1.xpose.msra.mxu0 0.0
    %95 = vmatprep.subr.mxu0 0.0
    %96 = vmatpush1.xpose.msra.mxu0 0.0
    %97 = vmatprep.subr.mxu0 0.0
    %98 = vmatpush1.xpose.msra.mxu0 0.0
    %99 = vmatprep.subr.mxu0 0.0
    %100 = vmatpush1.xpose.msra.mxu0 0.0
    %101 = vmatprep.subr.mxu0 0.0
    %102 = vmatpush1.xpose.msra.mxu0 0.0
    %103 = vmatprep.mubr.f32.mxu0 0.0
    %104 = vmatmul.mubr.f32.gmra.mrb[0].mxu0 %v15
    %v105 = vpop.f32.mrb[0].mxu0
    %v106 = vadd.f32 %v37, %v105
    %v107 = vpop.f32.mrb[0].mxu0
    %108 = vdwg.mxu0
    %109 = vst [vmem:[#allocation2] sm:$0xff] %v106
    // Predicated region
    $region14: #{_mlp_forward.1} parent=1 // pred_check
      _
    $region15: #{_mlp_forward.1} parent=1 // pred_check_branch
      %111 = sbr.rel (0) target = $region17
    $region16: #{_mlp_forward.1} parent=1 // pred_region
      %s113 = ssub.s32 128, 128
      %114 = vsyncadd [#allocation3], %s113
      %s116 = sshll.u32 [#allocation2], 4
      %s117 = int_to_ptr.vmem [resolvable:$true] %s116
      %119 = dma.vmem_to_hbm [thread:$0]  %s117, 128, %s3, [#allocation3]
    $region17: #{_mlp_forward.1} parent=1 // pred_fallthru
      _
    // Predicated region
    $region18: #{_mlp_forward.1} parent=1 // pred_check
      _
    $region19: #{_mlp_forward.1} parent=1 // pred_check_branch
      %121 = sbr.rel (0) target = $region21
    $region20: #{_mlp_forward.1} parent=1 // pred_region
      %122 = dma.done [#allocation3], 128
    $region21: #{_mlp_forward.1} parent=1 // pred_fallthru
      _
    %123 = vsyncpa [#allocation3], 1

</llo_original>
